<compile_context>
chip_gen: v6e
topology: v6e:2x2x1
jax: 0.10.0
libtpu: 0.0.40
codegen_flags: <defaults>
</compile_context>

<pallas_src>
import jax
import jax.numpy as jnp
from jax.experimental import pallas as pl
from jax.experimental.pallas import tpu as pltpu


def gru_seq_kernel(x_ref, wx_ref, wh_ref, b_ref, h0_ref, h_out_ref, h_scr):
    """One grid step = one GRU time step for one batch block.

    x_ref  : [1, BB, I]   current time step's inputs (auto-pipelined)
    wx_ref : [I, 3H]      packed [Wiz | Wir | Win]   (VMEM-resident, constant block)
    wh_ref : [H, 3H]      packed [Uhz | Uhr | Uhn]   (VMEM-resident, constant block)
    b_ref  : [1, 3H]      packed [bz  | br  | bn ]
    h0_ref : [BB, H]      initial hidden state for this batch block
    h_out  : [BB, H]      final hidden state (written only at t == T-1)
    h_scr  : [BB, H]      VMEM scratch carrying h across the time axis
    """
    t = pl.program_id(1)
    H = h_scr.shape[1]

    @pl.when(t == 0)
    def _():
        h_scr[...] = h0_ref[...]

    h = h_scr[...]                                   # [BB, H]
    x = x_ref[0]                                     # [BB, I]

    # Two lane-dense matmuls; gates packed along the 3H lane axis.
    pre_x = jnp.dot(x, wx_ref[...], preferred_element_type=jnp.float32)  # [BB, 3H]
    pre_h = jnp.dot(h, wh_ref[...], preferred_element_type=jnp.float32)  # [BB, 3H]
    b = b_ref[...]                                   # [1, 3H] broadcasts over batch

    z = jax.nn.sigmoid(pre_x[:, 0:H] + pre_h[:, 0:H] + b[:, 0:H])
    r = jax.nn.sigmoid(pre_x[:, H:2 * H] + pre_h[:, H:2 * H] + b[:, H:2 * H])
    # act1 == sigmoid and r gates only the h@Uhn term, as in the module.
    n = jax.nn.sigmoid(pre_x[:, 2 * H:3 * H]
                       + r * pre_h[:, 2 * H:3 * H]
                       + b[:, 2 * H:3 * H])

    h_new = h + z * (n - h)                          # == (1 - z) * h + z * n
    h_scr[...] = h_new

    @pl.when(t == pl.num_programs(1) - 1)
    def _():
        h_out_ref[...] = h_new


def pack_params(params):
    """One-time packing of the 9 GRU parameters (off the per-step path)."""
    Wiz, Uhz, bz, Wir, Uhr, br, Win, Uhn, bn = params
    wx = jnp.concatenate([Wiz, Wir, Win], axis=1)            # [I, 3H]
    wh = jnp.concatenate([Uhz, Uhr, Uhn], axis=1)            # [H, 3H]
    b = jnp.concatenate([bz, br, bn]).reshape(1, -1)         # [1, 3H]
    return wx, wh, b


def gru_sequence(xs, h0, params, *, batch_block=None):
    """Run the GRUCell recurrence over a whole sequence in one pallas_call.

    xs: [T, B, I]  inputs for all time steps
    h0: [B, H]     initial hidden state
    returns final hidden state h_T: [B, H]
    """
    T, B, I = xs.shape
    H = h0.shape[1]
    wx, wh, b = pack_params(params)

    BB = B if batch_block is None else batch_block
    assert B % BB == 0
    nb = B // BB

    h_final = pl.pallas_call(
        gru_seq_kernel,
        out_shape=jax.ShapeDtypeStruct((B, H), jnp.float32),
        grid_spec=pltpu.PrefetchScalarGridSpec(
            num_scalar_prefetch=0,
            grid=(nb, T),                                    # batch blocks, time
            in_specs=[
                pl.BlockSpec((1, BB, I), lambda bi, t: (t, bi, 0)),     # x_t
                pl.BlockSpec((I, 3 * H), lambda bi, t: (0, 0)),         # wx (resident)
                pl.BlockSpec((H, 3 * H), lambda bi, t: (0, 0)),         # wh (resident)
                pl.BlockSpec((1, 3 * H), lambda bi, t: (0, 0)),         # bias
                pl.BlockSpec((BB, H), lambda bi, t: (bi, 0)),           # h0
            ],
            out_specs=pl.BlockSpec((BB, H), lambda bi, t: (bi, 0)),     # final h
            scratch_shapes=[pltpu.VMEM((BB, H), jnp.float32)],          # carried h
        ),
        compiler_params=pltpu.CompilerParams(
            dimension_semantics=("parallel", "arbitrary")),
    )(xs, wx, wh, b, h0)
    return h_final


def gru_cell(x, h, params):
    """Single-step forward, identical semantics to GRUCell.forward(x, h)."""
    return gru_sequence(x[None], h, params)


def _ref_step(x, h, params):
    Wiz, Uhz, bz, Wir, Uhr, br, Win, Uhn, bn = params
    z = jax.nn.sigmoid(x @ Wiz + h @ Uhz + bz)
    r = jax.nn.sigmoid(x @ Wir + h @ Uhr + br)
    n = jax.nn.sigmoid(x @ Win + r * (h @ Uhn) + bn)
    return (1.0 - z) * h + z * n


if __name__ == "__main__":
    B, I, H, T = 8, 16, 32, 8   # batch, input_size, hidden_size, seq_len

    key = jax.random.PRNGKey(0)
    keys = jax.random.split(key, 12)

    # Deterministic synthetic parameters (the PyTorch __init__ leaves them
    # uninitialized Tensors; we use small random values here).
    Wiz = jax.random.normal(keys[0], (I, H), jnp.float32) * 0.1
    Uhz = jax.random.normal(keys[1], (H, H), jnp.float32) * 0.1
    bz = jax.random.normal(keys[2], (H,), jnp.float32) * 0.1
    Wir = jax.random.normal(keys[3], (I, H), jnp.float32) * 0.1
    Uhr = jax.random.normal(keys[4], (H, H), jnp.float32) * 0.1
    br = jax.random.normal(keys[5], (H,), jnp.float32) * 0.1
    Win = jax.random.normal(keys[6], (I, H), jnp.float32) * 0.1
    Uhn = jax.random.normal(keys[7], (H, H), jnp.float32) * 0.1
    bn = jax.random.normal(keys[8], (H,), jnp.float32) * 0.1
    params = (Wiz, Uhz, bz, Wir, Uhr, br, Win, Uhn, bn)

    xs = jax.random.normal(keys[9], (T, B, I), jnp.float32)
    h0 = jax.random.normal(keys[10], (B, H), jnp.float32)

    # Fused-recurrence kernel over the whole sequence.
    hT = gru_sequence(xs, h0, params)
    jax.block_until_ready(hT)

    # Pure-JAX reference: unrolled cell.
    h_ref = h0
    for t in range(T):
        h_ref = _ref_step(xs[t], h_ref, params)
    assert jnp.allclose(hT, h_ref, atol=1e-5, rtol=1e-5), (
        float(jnp.max(jnp.abs(hT - h_ref))))

    # Single-step path (module's forward signature) uses the same kernel (T=1).
    h1 = gru_cell(xs[0], h0, params)
    jax.block_until_ready(h1)
    h1_ref = _ref_step(xs[0], h0, params)
    assert jnp.allclose(h1, h1_ref, atol=1e-5, rtol=1e-5), (
        float(jnp.max(jnp.abs(h1 - h1_ref))))

    print("KERNEL_OK")
</pallas_src>

<mosaic_0001>
module attributes {stable_mosaic.version = 11 : i64} {
  func.func @gru_seq_kernel(%arg0: i32, %arg1: i32, %arg2: memref<1x8x16xf32, #tpu.memory_space<vmem>>, %arg3: memref<16x96xf32, #tpu.memory_space<vmem>>, %arg4: memref<32x96xf32, #tpu.memory_space<vmem>>, %arg5: memref<1x96xf32, #tpu.memory_space<vmem>>, %arg6: memref<8x32xf32, #tpu.memory_space<vmem>>, %arg7: memref<8x32xf32, #tpu.memory_space<vmem>>, %arg8: memref<8x32xf32, #tpu.memory_space<vmem>>) attributes {dimension_semantics = [#tpu.dimension_semantics<parallel>, #tpu.dimension_semantics<arbitrary>], iteration_bounds = array<i64: 1, 8>, scalar_prefetch = 0 : i64, scratch_operands = 1 : i64, tpu.core_type = #tpu.core_type<tc>, window_params = [{transform_indices = @transform_0, window_bounds = array<i64: 1, 8, 16>}, {pipeline_mode = #tpu.pipeline_mode<synchronous>, transform_indices = @transform_1, window_bounds = array<i64: 16, 96>}, {pipeline_mode = #tpu.pipeline_mode<synchronous>, transform_indices = @transform_2, window_bounds = array<i64: 32, 96>}, {pipeline_mode = #tpu.pipeline_mode<synchronous>, transform_indices = @transform_3, window_bounds = array<i64: 1, 96>}, {transform_indices = @transform_4, window_bounds = array<i64: 8, 32>}, {transform_indices = @transform_5, window_bounds = array<i64: 8, 32>}]} {
    %c0_i32 = arith.constant 0 : i32
    %0 = arith.cmpi eq, %arg1, %c0_i32 : i32
    %1 = arith.extui %0 : i1 to i32
    %c0_i32_0 = arith.constant 0 : i32
    %2 = arith.cmpi ne, %1, %c0_i32_0 : i32
    scf.if %2 {
      %c0_18 = arith.constant 0 : index
      %c0_19 = arith.constant 0 : index
      %52 = vector.load %arg6[%c0_18, %c0_19] : memref<8x32xf32, #tpu.memory_space<vmem>>, vector<8x32xf32>
      %c0_20 = arith.constant 0 : index
      %c0_21 = arith.constant 0 : index
      %53 = vector.load %arg8[%c0_20, %c0_21] : memref<8x32xf32, #tpu.memory_space<vmem>>, vector<8x32xf32>
      tpu.vector_store %arg8[%c0_20, %c0_21], %52 {strides = array<i32>} : memref<8x32xf32, #tpu.memory_space<vmem>>, vector<8x32xf32>,
    } else {
    }
    %c0 = arith.constant 0 : index
    %c0_1 = arith.constant 0 : index
    %3 = vector.load %arg8[%c0, %c0_1] : memref<8x32xf32, #tpu.memory_space<vmem>>, vector<8x32xf32>
    %c0_2 = arith.constant 0 : index
    %c0_3 = arith.constant 0 : index
    %c0_4 = arith.constant 0 : index
    %4 = vector.load %arg2[%c0_2, %c0_3, %c0_4] : memref<1x8x16xf32, #tpu.memory_space<vmem>>, vector<1x8x16xf32>
    %5 = vector.shape_cast %4 : vector<1x8x16xf32> to vector<8x16xf32>
    %c0_5 = arith.constant 0 : index
    %c0_6 = arith.constant 0 : index
    %6 = vector.load %arg3[%c0_5, %c0_6] : memref<16x96xf32, #tpu.memory_space<vmem>>, vector<16x96xf32>
    %cst = arith.constant dense<0.000000e+00> : vector<8x96xf32>
    %7 = tpu.matmul %5, %6, %cst {dimension_numbers = #tpu.dot_dimension_numbers<[1], [0], [0], [1], [0, 0, 1, 1], [], []>} : vector<8x16xf32>, vector<16x96xf32>, vector<8x96xf32> -> vector<8x96xf32>
    %c0_7 = arith.constant 0 : index
    %c0_8 = arith.constant 0 : index
    %8 = vector.load %arg4[%c0_7, %c0_8] : memref<32x96xf32, #tpu.memory_space<vmem>>, vector<32x96xf32>
    %cst_9 = arith.constant dense<0.000000e+00> : vector<8x96xf32>
    %9 = tpu.matmul %3, %8, %cst_9 {dimension_numbers = #tpu.dot_dimension_numbers<[1], [0], [0], [1], [0, 0, 1, 1], [], []>} : vector<8x32xf32>, vector<32x96xf32>, vector<8x96xf32> -> vector<8x96xf32>
    %c0_10 = arith.constant 0 : index
    %c0_11 = arith.constant 0 : index
    %10 = vector.load %arg5[%c0_10, %c0_11] : memref<1x96xf32, #tpu.memory_space<vmem>>, vector<1x96xf32>
    %11 = vector.extract_strided_slice %7 {offsets = [0, 0], sizes = [8, 32], strides = [1, 1]} : vector<8x96xf32> to vector<8x32xf32>
    %12 = vector.extract_strided_slice %9 {offsets = [0, 0], sizes = [8, 32], strides = [1, 1]} : vector<8x96xf32> to vector<8x32xf32>
    %13 = arith.addf %11, %12 : vector<8x32xf32>
    %14 = vector.extract_strided_slice %10 {offsets = [0, 0], sizes = [1, 32], strides = [1, 1]} : vector<1x96xf32> to vector<1x32xf32>
    %15 = vector.broadcast %14 : vector<1x32xf32> to vector<8x32xf32>
    %16 = arith.addf %13, %15 : vector<8x32xf32>
    %17 = arith.negf %16 : vector<8x32xf32>
    %18 = math.exp %17 : vector<8x32xf32>
    %cst_12 = arith.constant 1.000000e+00 : f32
    %19 = vector.broadcast %cst_12 : f32 to vector<8x32xf32>
    %20 = arith.addf %19, %18 : vector<8x32xf32>
    %21 = arith.divf %19, %20 : vector<8x32xf32>
    %22 = vector.extract_strided_slice %7 {offsets = [0, 32], sizes = [8, 32], strides = [1, 1]} : vector<8x96xf32> to vector<8x32xf32>
    %23 = vector.extract_strided_slice %9 {offsets = [0, 32], sizes = [8, 32], strides = [1, 1]} : vector<8x96xf32> to vector<8x32xf32>
    %24 = arith.addf %22, %23 : vector<8x32xf32>
    %25 = vector.extract_strided_slice %10 {offsets = [0, 32], sizes = [1, 32], strides = [1, 1]} : vector<1x96xf32> to vector<1x32xf32>
    %26 = vector.broadcast %25 : vector<1x32xf32> to vector<8x32xf32>
    %27 = arith.addf %24, %26 : vector<8x32xf32>
    %28 = arith.negf %27 : vector<8x32xf32>
    %29 = math.exp %28 : vector<8x32xf32>
    %cst_13 = arith.constant 1.000000e+00 : f32
    %30 = vector.broadcast %cst_13 : f32 to vector<8x32xf32>
    %31 = arith.addf %30, %29 : vector<8x32xf32>
    %32 = arith.divf %30, %31 : vector<8x32xf32>
    %33 = vector.extract_strided_slice %7 {offsets = [0, 64], sizes = [8, 32], strides = [1, 1]} : vector<8x96xf32> to vector<8x32xf32>
    %34 = vector.extract_strided_slice %9 {offsets = [0, 64], sizes = [8, 32], strides = [1, 1]} : vector<8x96xf32> to vector<8x32xf32>
    %35 = arith.mulf %32, %34 : vector<8x32xf32>
    %36 = arith.addf %33, %35 : vector<8x32xf32>
    %37 = vector.extract_strided_slice %10 {offsets = [0, 64], sizes = [1, 32], strides = [1, 1]} : vector<1x96xf32> to vector<1x32xf32>
    %38 = vector.broadcast %37 : vector<1x32xf32> to vector<8x32xf32>
    %39 = arith.addf %36, %38 : vector<8x32xf32>
    %40 = arith.negf %39 : vector<8x32xf32>
    %41 = math.exp %40 : vector<8x32xf32>
    %cst_14 = arith.constant 1.000000e+00 : f32
    %42 = vector.broadcast %cst_14 : f32 to vector<8x32xf32>
    %43 = arith.addf %42, %41 : vector<8x32xf32>
    %44 = arith.divf %42, %43 : vector<8x32xf32>
    %45 = arith.subf %44, %3 : vector<8x32xf32>
    %46 = arith.mulf %21, %45 : vector<8x32xf32>
    %47 = arith.addf %3, %46 : vector<8x32xf32>
    %c0_15 = arith.constant 0 : index
    %c0_16 = arith.constant 0 : index
    %48 = vector.load %arg8[%c0_15, %c0_16] : memref<8x32xf32, #tpu.memory_space<vmem>>, vector<8x32xf32>
    tpu.vector_store %arg8[%c0_15, %c0_16], %47 {strides = array<i32>} : memref<8x32xf32, #tpu.memory_space<vmem>>, vector<8x32xf32>,
    %c7_i32 = arith.constant 7 : i32
    %49 = arith.cmpi eq, %arg1, %c7_i32 : i32
    %50 = arith.extui %49 : i1 to i32
    %c0_i32_17 = arith.constant 0 : i32
    %51 = arith.cmpi ne, %50, %c0_i32_17 : i32
    scf.if %51 {
      %c0_18 = arith.constant 0 : index
      %c0_19 = arith.constant 0 : index
      %52 = vector.load %arg7[%c0_18, %c0_19] : memref<8x32xf32, #tpu.memory_space<vmem>>, vector<8x32xf32>
      tpu.vector_store %arg7[%c0_18, %c0_19], %47 {strides = array<i32>} : memref<8x32xf32, #tpu.memory_space<vmem>>, vector<8x32xf32>,
    } else {
    }
    return
  }
  func.func @transform_0(%arg0: i32, %arg1: i32) -> (i32, i32, i32) {
    %c0_i32 = arith.constant 0 : i32
    %c0_i32_0 = arith.constant 0 : i32
    return %arg1, %arg0, %c0_i32 : i32, i32, i32
  }
  func.func @transform_1(%arg0: i32, %arg1: i32) -> (i32, i32) {
    %c0_i32 = arith.constant 0 : i32
    %c0_i32_0 = arith.constant 0 : i32
    %c0_i32_1 = arith.constant 0 : i32
    return %c0_i32, %c0_i32_0 : i32, i32
  }
  func.func @transform_2(%arg0: i32, %arg1: i32) -> (i32, i32) {
    %c0_i32 = arith.constant 0 : i32
    %c0_i32_0 = arith.constant 0 : i32
    %c0_i32_1 = arith.constant 0 : i32
    return %c0_i32, %c0_i32_0 : i32, i32
  }
  func.func @transform_3(%arg0: i32, %arg1: i32) -> (i32, i32) {
    %c0_i32 = arith.constant 0 : i32
    %c0_i32_0 = arith.constant 0 : i32
    %c0_i32_1 = arith.constant 0 : i32
    return %c0_i32, %c0_i32_0 : i32, i32
  }
  func.func @transform_4(%arg0: i32, %arg1: i32) -> (i32, i32) {
    %c0_i32 = arith.constant 0 : i32
    %c0_i32_0 = arith.constant 0 : i32
    return %arg0, %c0_i32 : i32, i32
  }
  func.func @transform_5(%arg0: i32, %arg1: i32) -> (i32, i32) {
    %c0_i32 = arith.constant 0 : i32
    %c0_i32_0 = arith.constant 0 : i32
    return %arg0, %c0_i32 : i32, i32
  }
}

</mosaic_0001>

<llo_original>
// kernel: tpu_custom_call.1
$region0: #{tpu_custom_call.1}
  #allocation0 [shape = 'u32[]', space=smem, size = 0x4, offset = 0x4, fixed_abs, tag = 'smem constant byte address 0x4 - core index']
  #allocation1 [shape = 'u32[144,128]{1,0:T(1,128)}', space=vmem, size = 0x12000, scoped, tag = 'internal scratch']
  #allocation2 [shape = 'f32[8,32]{1,0:T(8,128)}', space=vmem, size = 0x1000, scoped, tag = 'scratch operand']
  %s0 = inlined_call_operand.hbm [shape: f32[8,8,16], index: 0, kind: input, shape index: {}]
  %s1 = inlined_call_operand.hbm [shape: f32[16,96], index: 1, kind: input, shape index: {}]
  %s2 = inlined_call_operand.hbm [shape: f32[32,96], index: 2, kind: input, shape index: {}]
  %s3 = inlined_call_operand.vmem [shape: f32[1,96], index: 3, kind: input, shape index: {}]
  %s4 = inlined_call_operand.hbm [shape: f32[8,32], index: 4, kind: input, shape index: {}]
  %s5 = inlined_call_operand.hbm [shape: f32[8,32], index: 5, kind: output, shape index: {}]
  %s6 = sld [smem:[#allocation0]]
  $region77: #{tpu_custom_call.1} parent=0
    _
  %s8 = ssub.s32 1, %s6
  %s9 = scalar_select 0, %s8, %s6
  $region1: #{tpu_custom_call.1} parent=0
    #allocation3 [shape = 'u8[8192]{0}', space=vmem, size = 0x2000, scoped, tag = 'input window, operand 0']
    #allocation4 [shape = 's32[2]{0}', space=sflag, size = 0x8, scoped, tag = 'scoped memory for tpu_custom_call.1']
    #allocation5 [shape = 's32[2]{0}', space=sflag, size = 0x8, scoped, tag = 'scoped memory for tpu_custom_call.1']
    #allocation6 [shape = 'u8[8192]{0}', space=vmem, size = 0x2000, scoped, tag = 'input window, operand 1, single buffered']
    #allocation7 [shape = 's32[1]{0}', space=sflag, size = 0x4, scoped, tag = 'scoped memory for tpu_custom_call.1']
    #allocation8 [shape = 'u8[16384]{0}', space=vmem, size = 0x4000, scoped, tag = 'input window, operand 2, single buffered']
    #allocation9 [shape = 'u8[4096]{0}', space=vmem, size = 0x1000, scoped, tag = 'input window, operand 4, single buffered']
    #allocation10 [shape = 's32[1]{0}', space=sflag, size = 0x4, scoped, tag = 'scoped memory for tpu_custom_call.1']
    #allocation11 [shape = 'u8[4096]{0}', space=vmem, size = 0x1000, scoped, tag = 'output window, operand 0, single buffered']
    %10 = vsyncpa [#allocation4], 0
    %s11 = scalar_lea.sflag [#allocation4], 1
    %12 = vsyncpa %s11, 0
    %13 = vsyncpa [#allocation7], 0
    %14 = vsyncpa [#allocation10], 0
    %15 = vsyncpa [#allocation5], 0
    loop: start=0, step=1, limit=10
    $region2: #{tpu_custom_call.1} parent=1 // loop_pre_header
      _
    $region3: #{tpu_custom_call.1} parent=1 // loop_header
      %s17 = sphi 0, %s21
      %p18 = scmp.ge.s32.totalorder %s17, 10
      %s24 = sphi 0, %s36
      %s25 = sphi 0, %s32
      %s26 = sphi 0, %s24
      %s27 = sphi 0, %s25
      %s28 = sphi 0, %s26
      %s29 = sphi 0, %s27
      %s41 = sphi 0, %s43
      %s44 = sphi 0, %s41
      %s45 = sphi 0, %s44
      %s61 = sphi 0, %s45
      %s65 = sphi 0, %s65
      %s67 = sphi 0, %s65
      %s68 = sphi 0, %s67
      %s82 = sphi 0, %s68
      %s86 = sphi 0, %s86
      %s88 = sphi 0, %s86
      %s89 = sphi 0, %s88
      %s103 = sphi 0, %s89
      %s107 = sphi 0, %s107
      %s109 = sphi 0, %s107
      %s110 = sphi 0, %s109
      %s124 = sphi 0, %s110
      %s130 = sphi 0, %s132
      %s133 = sphi 0, %s130
      %s134 = sphi 0, %s133
      %s150 = sphi 0, %s134
      %s156 = sphi 0, %s158
      %s159 = sphi 0, %s156
      %s160 = sphi 0, %s159
      %s176 = sphi 0, %s160
    $region4: #{tpu_custom_call.1} parent=1 // loop_header_branch
      %20 = sbr.rel (%p18) target = $region8
    $region5: #{tpu_custom_call.1} parent=1 // loop_body
      %s22 = ssub.s32 %s17, 1
      %s23 = ssub.s32 %s17, 2
      %s30 = sadd.s32 1, %s25
      %p31 = scmp.ge.s32.totalorder %s30, 8
      %s32 = scalar_select %p31, 0, %s30
      %s33 = sadd.s32 1, %s24
      %s34 = scalar_select %p31, %s33, %s24
      %p35 = scmp.ge.s32.totalorder %s34, 1
      %s36 = scalar_select %p35, 0, %s34
      %s37 = ssub.s32 %s25, %s32
      %s38 = ssub.s32 %s24, %s36
      %s39 = sor.u32 %s37, %s38
      %p40 = scmp.eq.s32.totalorder %s39, 0
      %s42 = sadd.s32 %s41, 1
      %s43 = scalar_select %p40, %s41, %s42
      %p46 = pneg %p40
      %p47 = scmp.eq.s32.totalorder %s17, 7
      %p48 = por %p46, %p47
      %p49 = scmp.ne.s32.totalorder %s41, %s44
      %p50 = scmp.eq.s32.totalorder %s17, 0
      %p51 = por %p49, %p50
      %p52 = scmp.ne.s32.totalorder %s41, %s44
      %p53 = scmp.eq.s32.totalorder %s22, 7
      %p54 = por %p52, %p53
      %p55 = scmp.ne.s32.totalorder %s44, %s45
      %p56 = scmp.eq.s32.totalorder %s22, 0
      %p57 = por %p55, %p56
      %p58 = scmp.ne.s32.totalorder %s44, %s45
      %p59 = scmp.eq.s32.totalorder %s23, 7
      %p60 = por %p58, %p59
      %p62 = scmp.ne.s32.totalorder %s45, %s61
      %p63 = scmp.eq.s32.totalorder %s23, 0
      %p64 = por %p62, %p63
      %s66 = sadd.s32 %s65, 1
      %p69 = scmp.eq.s32.totalorder %s17, 7
      %p70 = scmp.ne.s32.totalorder %s65, %s67
      %p71 = scmp.eq.s32.totalorder %s17, 0
      %p72 = por %p70, %p71
      %p73 = scmp.ne.s32.totalorder %s65, %s67
      %p74 = scmp.eq.s32.totalorder %s22, 7
      %p75 = por %p73, %p74
      %p76 = scmp.ne.s32.totalorder %s67, %s68
      %p77 = scmp.eq.s32.totalorder %s22, 0
      %p78 = por %p76, %p77
      %p79 = scmp.ne.s32.totalorder %s67, %s68
      %p80 = scmp.eq.s32.totalorder %s23, 7
      %p81 = por %p79, %p80
      %p83 = scmp.ne.s32.totalorder %s68, %s82
      %p84 = scmp.eq.s32.totalorder %s23, 0
      %p85 = por %p83, %p84
      %s87 = sadd.s32 %s86, 1
      %p90 = scmp.eq.s32.totalorder %s17, 7
      %p91 = scmp.ne.s32.totalorder %s86, %s88
      %p92 = scmp.eq.s32.totalorder %s17, 0
      %p93 = por %p91, %p92
      %p94 = scmp.ne.s32.totalorder %s86, %s88
      %p95 = scmp.eq.s32.totalorder %s22, 7
      %p96 = por %p94, %p95
      %p97 = scmp.ne.s32.totalorder %s88, %s89
      %p98 = scmp.eq.s32.totalorder %s22, 0
      %p99 = por %p97, %p98
      %p100 = scmp.ne.s32.totalorder %s88, %s89
      %p101 = scmp.eq.s32.totalorder %s23, 7
      %p102 = por %p100, %p101
      %p104 = scmp.ne.s32.totalorder %s89, %s103
      %p105 = scmp.eq.s32.totalorder %s23, 0
      %p106 = por %p104, %p105
      %s108 = sadd.s32 %s107, 1
      %p111 = scmp.eq.s32.totalorder %s17, 7
      %p112 = scmp.ne.s32.totalorder %s107, %s109
      %p113 = scmp.eq.s32.totalorder %s17, 0
      %p114 = por %p112, %p113
      %p115 = scmp.ne.s32.totalorder %s107, %s109
      %p116 = scmp.eq.s32.totalorder %s22, 7
      %p117 = por %p115, %p116
      %p118 = scmp.ne.s32.totalorder %s109, %s110
      %p119 = scmp.eq.s32.totalorder %s22, 0
      %p120 = por %p118, %p119
      %p121 = scmp.ne.s32.totalorder %s109, %s110
      %p122 = scmp.eq.s32.totalorder %s23, 7
      %p123 = por %p121, %p122
      %p125 = scmp.ne.s32.totalorder %s110, %s124
      %p126 = scmp.eq.s32.totalorder %s23, 0
      %p127 = por %p125, %p126
      %s128 = ssub.s32 %s24, %s36
      %p129 = scmp.eq.s32.totalorder %s128, 0
      %s131 = sadd.s32 %s130, 1
      %s132 = scalar_select %p129, %s130, %s131
      %p135 = pneg %p129
      %p136 = scmp.eq.s32.totalorder %s17, 7
      %p137 = por %p135, %p136
      %p138 = scmp.ne.s32.totalorder %s130, %s133
      %p139 = scmp.eq.s32.totalorder %s17, 0
      %p140 = por %p138, %p139
      %p141 = scmp.ne.s32.totalorder %s130, %s133
      %p142 = scmp.eq.s32.totalorder %s22, 7
      %p143 = por %p141, %p142
      %p144 = scmp.ne.s32.totalorder %s133, %s134
      %p145 = scmp.eq.s32.totalorder %s22, 0
      %p146 = por %p144, %p145
      %p147 = scmp.ne.s32.totalorder %s133, %s134
      %p148 = scmp.eq.s32.totalorder %s23, 7
      %p149 = por %p147, %p148
      %p151 = scmp.ne.s32.totalorder %s134, %s150
      %p152 = scmp.eq.s32.totalorder %s23, 0
      %p153 = por %p151, %p152
      %s154 = ssub.s32 %s24, %s36
      %p155 = scmp.eq.s32.totalorder %s154, 0
      %s157 = sadd.s32 %s156, 1
      %s158 = scalar_select %p155, %s156, %s157
      %p161 = pneg %p155
      %p162 = scmp.eq.s32.totalorder %s17, 7
      %p163 = por %p161, %p162
      %p164 = scmp.ne.s32.totalorder %s156, %s159
      %p165 = scmp.eq.s32.totalorder %s17, 0
      %p166 = por %p164, %p165
      %p167 = scmp.ne.s32.totalorder %s156, %s159
      %p168 = scmp.eq.s32.totalorder %s22, 7
      %p169 = por %p167, %p168
      %p170 = scmp.ne.s32.totalorder %s159, %s160
      %p171 = scmp.eq.s32.totalorder %s22, 0
      %p172 = por %p170, %p171
      %p173 = scmp.ne.s32.totalorder %s159, %s160
      %p174 = scmp.eq.s32.totalorder %s23, 7
      %p175 = por %p173, %p174
      %p177 = scmp.ne.s32.totalorder %s160, %s176
      %p178 = scmp.eq.s32.totalorder %s23, 0
      %p179 = por %p177, %p178
      %p180 = scmp.le.s32.totalorder 1, %s17
      %p181 = scmp.lt.s32.totalorder %s17, 9
      %p182 = pnand %p180, %p181
      %p183 = pneg %p182
      // Predicated region
      $region9: #{tpu_custom_call.1} parent=5 // pred_check
        _
      $region10: #{tpu_custom_call.1} parent=5 // pred_check_branch
        %185 = sbr.rel (%p182) target = $region12
      $region11: #{tpu_custom_call.1} parent=5 // pred_region
        %s186 = ssub.s32 %s17, 1
        // Predicated region
        $region13: #{tpu_custom_call.1} parent=11 // pred_check
          %p187 = pneg %p78
        $region14: #{tpu_custom_call.1} parent=11 // pred_check_branch
          %189 = sbr.rel (%p187) target = $region16
        $region15: #{tpu_custom_call.1} parent=11 // pred_region
          %s191 = ssub.s32 256, 256
          %192 = vsyncadd [#allocation7], %s191
          %s193 = sshll.u32 [#allocation6], 4
          %s194 = int_to_ptr.vmem [resolvable:$true] %s193
          %199 = dma.hbm_to_vmem [thread:$0]  %s1, 256, %s194, [#allocation7], 128, 128, 8
        $region16: #{tpu_custom_call.1} parent=11 // pred_fallthru
          _
        // Predicated region
        $region17: #{tpu_custom_call.1} parent=11 // pred_check
          %p200 = pneg %p99
        $region18: #{tpu_custom_call.1} parent=11 // pred_check_branch
          %202 = sbr.rel (%p200) target = $region20
        $region19: #{tpu_custom_call.1} parent=11 // pred_region
          %s204 = ssub.s32 512, 512
          %205 = vsyncadd [#allocation7], %s204
          %s206 = sshll.u32 [#allocation8], 4
          %s207 = int_to_ptr.vmem [resolvable:$true] %s206
          %212 = dma.hbm_to_vmem [thread:$0]  %s2, 512, %s207, [#allocation7], 128, 128, 8
        $region20: #{tpu_custom_call.1} parent=11 // pred_fallthru
          _
        // Predicated region
        $region21: #{tpu_custom_call.1} parent=11 // pred_check
          %p213 = pneg %p120
        $region22: #{tpu_custom_call.1} parent=11 // pred_check_branch
          %215 = sbr.rel (%p213) target = $region24
        $region23: #{tpu_custom_call.1} parent=11 // pred_region
          _
        $region24: #{tpu_custom_call.1} parent=11 // pred_fallthru
          _
        // Predicated region
        $region25: #{tpu_custom_call.1} parent=11 // pred_check
          %p216 = pneg %p146
        $region26: #{tpu_custom_call.1} parent=11 // pred_check_branch
          %218 = sbr.rel (%p216) target = $region28
        $region27: #{tpu_custom_call.1} parent=11 // pred_region
          %s220 = ssub.s32 128, 128
          %221 = vsyncadd [#allocation10], %s220
          %s222 = smul.addr %s26, 128
          %s223 = scalar_lea.hbm %s4, %s222
          %s225 = sshll.u32 [#allocation9], 4
          %s226 = int_to_ptr.vmem [resolvable:$true] %s225
          %228 = dma.hbm_to_vmem [thread:$0]  %s223, 128, %s226, [#allocation10]
        $region28: #{tpu_custom_call.1} parent=11 // pred_fallthru
          _
      $region12: #{tpu_custom_call.1} parent=5 // pred_fallthru
        _
      %p229 = scmp.lt.s32.totalorder %s17, 8
      // Predicated region
      $region29: #{tpu_custom_call.1} parent=5 // pred_check
        %p230 = pneg %p229
      $region30: #{tpu_custom_call.1} parent=5 // pred_check_branch
        %232 = sbr.rel (%p230) target = $region32
      $region31: #{tpu_custom_call.1} parent=5 // pred_region
        // Predicated region
        $region33: #{tpu_custom_call.1} parent=31 // pred_check
          %p233 = pneg %p51
        $region34: #{tpu_custom_call.1} parent=31 // pred_check_branch
          %235 = sbr.rel (%p233) target = $region36
        $region35: #{tpu_custom_call.1} parent=31 // pred_region
          %s236 = sand.u32 %s41, 1
          %s237 = scalar_lea.sflag [#allocation4], %s236
          %s238 = sand.u32 %s41, 1
          %s239 = smul.addr %s238, 8
          %s240 = scalar_lea.vmem [#allocation3], %s239
          %s242 = ssub.s32 128, 128
          %243 = vsyncadd %s237, %s242
          %s244 = sadd.s32 %s24, %s25
          %s245 = smul.addr %s244, 128
          %s246 = scalar_lea.hbm %s0, %s245
          %s248 = sshll.u32 %s240, 4
          %s249 = int_to_ptr.vmem [resolvable:$true] %s248
          %251 = dma.hbm_to_vmem [thread:$0]  %s246, 128, %s249, %s237
        $region36: #{tpu_custom_call.1} parent=31 // pred_fallthru
          _
      $region32: #{tpu_custom_call.1} parent=5 // pred_fallthru
        _
      %p252 = scmp.le.s32.totalorder 1, %s17
      %p253 = scmp.lt.s32.totalorder %s17, 9
      %p254 = pnand %p252, %p253
      %p255 = pneg %p254
      // Predicated region
      $region37: #{tpu_custom_call.1} parent=5 // pred_check
        _
      $region38: #{tpu_custom_call.1} parent=5 // pred_check_branch
        %257 = sbr.rel (%p254) target = $region40
      $region39: #{tpu_custom_call.1} parent=5 // pred_region
        %s258 = ssub.s32 %s17, 1
        %s259 = sand.u32 %s44, 1
        %s260 = scalar_lea.sflag [#allocation4], %s259
        %s261 = sand.u32 %s44, 1
        %s262 = smul.addr %s261, 8
        %s263 = scalar_lea.vmem [#allocation3], %s262
        // Predicated region
        $region41: #{tpu_custom_call.1} parent=39 // pred_check
          %p264 = pneg %p57
        $region42: #{tpu_custom_call.1} parent=39 // pred_check_branch
          %266 = sbr.rel (%p264) target = $region44
        $region43: #{tpu_custom_call.1} parent=39 // pred_region
          %267 = dma.done %s260, 128
        $region44: #{tpu_custom_call.1} parent=39 // pred_fallthru
          _
        // Predicated region
        $region45: #{tpu_custom_call.1} parent=39 // pred_check
          %p268 = pneg %p78
        $region46: #{tpu_custom_call.1} parent=39 // pred_check_branch
          %270 = sbr.rel (%p268) target = $region48
        $region47: #{tpu_custom_call.1} parent=39 // pred_region
          %271 = dma.done [#allocation7], 256
        $region48: #{tpu_custom_call.1} parent=39 // pred_fallthru
          _
        // Predicated region
        $region49: #{tpu_custom_call.1} parent=39 // pred_check
          %p272 = pneg %p99
        $region50: #{tpu_custom_call.1} parent=39 // pred_check_branch
          %274 = sbr.rel (%p272) target = $region52
        $region51: #{tpu_custom_call.1} parent=39 // pred_region
          %275 = dma.done [#allocation7], 512
        $region52: #{tpu_custom_call.1} parent=39 // pred_fallthru
          _
        // Predicated region
        $region53: #{tpu_custom_call.1} parent=39 // pred_check
          %p276 = pneg %p146
        $region54: #{tpu_custom_call.1} parent=39 // pred_check_branch
          %278 = sbr.rel (%p276) target = $region56
        $region55: #{tpu_custom_call.1} parent=39 // pred_region
          %279 = dma.done [#allocation10], 128
        $region56: #{tpu_custom_call.1} parent=39 // pred_fallthru
          _
        %s280 = sand.u32 %s44, 1
        %s281 = scalar_lea.sflag [#allocation4], %s280
        %s282 = sand.u32 %s44, 1
        %s283 = smul.addr %s282, 8
        %s284 = scalar_lea.vmem [#allocation3], %s283
        %p285 = pneg %p57
        %p286 = pneg %p54
        %p287 = pneg %p78
        %p288 = pneg %p75
        %p289 = pneg %p99
        %p290 = pneg %p96
        %p291 = pneg %p120
        %p292 = pneg %p117
        %p293 = pneg %p146
        %p294 = pneg %p143
        %p295 = pneg %p172
        %p296 = pneg %p169
        %p297 = scmp.eq.s32.totalorder %s27, 0
        // Predicated region
        $region57: #{tpu_custom_call.1} parent=39 // pred_check
          %p298 = pneg %p297
        $region58: #{tpu_custom_call.1} parent=39 // pred_check_branch
          %300 = sbr.rel (%p298) target = $region60
        $region59: #{tpu_custom_call.1} parent=39 // pred_region
          %v301 = vld [vmem:[#allocation9] sm:$0xff]
          %vm302 = vcmask 261120
          %303 = vst.msk [vmem:[#allocation2] sm:$0xff] %vm302, %v301
        $region60: #{tpu_custom_call.1} parent=39 // pred_fallthru
          _
        %v304 = vld [vmem:[#allocation2] sm:$0xff]
        %v305 = vld [vmem:[%s263] sm:$0xff]
        %v306 = vld [vmem:[#allocation6] sm:$0xff]
        %v307 = vld [vmem:[#allocation6 + $0x8] sm:$0xff]
        %vm308 = vcmask 130048
        %v310 = vsel %vm308, %v305, 0
        %312 = vmatprep.subr.mxu0 0.0
        %313 = vmatpush1.msra.mxu0 0.0
        %314 = vmatprep.subr.mxu0 0.0
        %315 = vmatpush1.msra.mxu0 0.0
        %316 = vmatprep.subr.mxu0 0.0
        %317 = vmatpush1.msra.mxu0 0.0
        %318 = vmatprep.subr.mxu0 0.0
        %319 = vmatpush1.msra.mxu0 0.0
        %320 = vmatprep.subr.mxu0 0.0
        %321 = vmatpush1.msra.mxu0 0.0
        %322 = vmatprep.subr.mxu0 0.0
        %323 = vmatpush1.msra.mxu0 0.0
        %324 = vmatprep.subr.mxu0 0.0
        %325 = vmatpush1.msra.mxu0 0.0
        %326 = vmatprep.subr.mxu0 0.0
        %327 = vmatpush1.msra.mxu0 0.0
        %328 = vmatprep.subr.mxu0 0.0
        %329 = vmatpush1.msra.mxu0 0.0
        %330 = vmatprep.subr.mxu0 0.0
        %331 = vmatpush1.msra.mxu0 0.0
        %332 = vmatprep.subr.mxu0 0.0
        %333 = vmatpush1.msra.mxu0 0.0
        %334 = vmatprep.subr.mxu0 0.0
        %335 = vmatpush1.msra.mxu0 0.0
        %336 = vmatprep.subr.mxu0 0.0
        %337 = vmatpush1.msra.mxu0 0.0
        %338 = vmatprep.subr.mxu0 0.0
        %339 = vmatpush1.msra.mxu0 0.0
        %340 = vmatprep.subr.mxu0 0.0
        %341 = vmatpush1.msra.mxu0 %v307
        %342 = vmatprep.subr.mxu0 0.0
        %343 = vmatpush1.msra.mxu0 %v306
        %344 = vmatprep.subr.mxu0 0.0
        %345 = vmatpush2.msra.mxu0 0.0
        %346 = vmatprep.subr.mxu0 0.0
        %347 = vmatpush2.msra.mxu0 0.0
        %348 = vmatprep.subr.mxu0 0.0
        %349 = vmatpush2.msra.mxu0 0.0
        %350 = vmatprep.subr.mxu0 0.0
        %351 = vmatpush2.msra.mxu0 0.0
        %352 = vmatprep.subr.mxu0 0.0
        %353 = vmatpush2.msra.mxu0 0.0
        %354 = vmatprep.subr.mxu0 0.0
        %355 = vmatpush2.msra.mxu0 0.0
        %356 = vmatprep.subr.mxu0 0.0
        %357 = vmatpush2.msra.mxu0 0.0
        %358 = vmatprep.subr.mxu0 0.0
        %359 = vmatpush2.msra.mxu0 0.0
        %360 = vmatprep.subr.mxu0 0.0
        %361 = vmatpush2.msra.mxu0 0.0
        %362 = vmatprep.subr.mxu0 0.0
        %363 = vmatpush2.msra.mxu0 0.0
        %364 = vmatprep.subr.mxu0 0.0
        %365 = vmatpush2.msra.mxu0 0.0
        %366 = vmatprep.subr.mxu0 0.0
        %367 = vmatpush2.msra.mxu0 0.0
        %368 = vmatprep.subr.mxu0 0.0
        %369 = vmatpush2.msra.mxu0 0.0
        %370 = vmatprep.subr.mxu0 0.0
        %371 = vmatpush2.msra.mxu0 0.0
        %372 = vmatprep.subr.mxu0 0.0
        %373 = vmatpush2.msra.mxu0 0.0
        %374 = vmatprep.subr.mxu0 0.0
        %375 = vmatpush2.msra.mxu0 0.0
        %376 = vmatprep.mubr.f32.mxu0 0.0
        %377 = vmatmul.mubr.f32.gmra.mxu0 %v310
        %v378 = vpop.f32.mrf.mxu0
        %v379 = vadd.f32 0.0, %v378
        %v380 = vpop.f32.mrf.mxu0
        %381 = vdwg.mxu0
        %v382 = vld [vmem:[#allocation8] sm:$0xff]
        %v383 = vld [vmem:[#allocation8 + $0x8] sm:$0xff]
        %v384 = vld [vmem:[#allocation8 + $0x10] sm:$0xff]
        %v385 = vld [vmem:[#allocation8 + $0x18] sm:$0xff]
        %vm386 = vcmask 261120
        %v388 = vsel %vm386, %v304, 0
        %390 = vmatprep.subr.mxu0 0.0
        %391 = vmatpush1.msra.mxu0 0.0
        %392 = vmatprep.subr.mxu0 0.0
        %393 = vmatpush1.msra.mxu0 0.0
        %394 = vmatprep.subr.mxu0 0.0
        %395 = vmatpush1.msra.mxu0 0.0
        %396 = vmatprep.subr.mxu0 0.0
        %397 = vmatpush1.msra.mxu0 0.0
        %398 = vmatprep.subr.mxu0 0.0
        %399 = vmatpush1.msra.mxu0 0.0
        %400 = vmatprep.subr.mxu0 0.0
        %401 = vmatpush1.msra.mxu0 0.0
        %402 = vmatprep.subr.mxu0 0.0
        %403 = vmatpush1.msra.mxu0 0.0
        %404 = vmatprep.subr.mxu0 0.0
        %405 = vmatpush1.msra.mxu0 0.0
        %406 = vmatprep.subr.mxu0 0.0
        %407 = vmatpush1.msra.mxu0 0.0
        %408 = vmatprep.subr.mxu0 0.0
        %409 = vmatpush1.msra.mxu0 0.0
        %410 = vmatprep.subr.mxu0 0.0
        %411 = vmatpush1.msra.mxu0 0.0
        %412 = vmatprep.subr.mxu0 0.0
        %413 = vmatpush1.msra.mxu0 0.0
        %414 = vmatprep.subr.mxu0 0.0
        %415 = vmatpush1.msra.mxu0 %v385
        %416 = vmatprep.subr.mxu0 0.0
        %417 = vmatpush1.msra.mxu0 %v384
        %418 = vmatprep.subr.mxu0 0.0
        %419 = vmatpush1.msra.mxu0 %v383
        %420 = vmatprep.subr.mxu0 0.0
        %421 = vmatpush1.msra.mxu0 %v382
        %422 = vmatprep.subr.mxu0 0.0
        %423 = vmatpush2.msra.mxu0 0.0
        %424 = vmatprep.subr.mxu0 0.0
        %425 = vmatpush2.msra.mxu0 0.0
        %426 = vmatprep.subr.mxu0 0.0
        %427 = vmatpush2.msra.mxu0 0.0
        %428 = vmatprep.subr.mxu0 0.0
        %429 = vmatpush2.msra.mxu0 0.0
        %430 = vmatprep.subr.mxu0 0.0
        %431 = vmatpush2.msra.mxu0 0.0
        %432 = vmatprep.subr.mxu0 0.0
        %433 = vmatpush2.msra.mxu0 0.0
        %434 = vmatprep.subr.mxu0 0.0
        %435 = vmatpush2.msra.mxu0 0.0
        %436 = vmatprep.subr.mxu0 0.0
        %437 = vmatpush2.msra.mxu0 0.0
        %438 = vmatprep.subr.mxu0 0.0
        %439 = vmatpush2.msra.mxu0 0.0
        %440 = vmatprep.subr.mxu0 0.0
        %441 = vmatpush2.msra.mxu0 0.0
        %442 = vmatprep.subr.mxu0 0.0
        %443 = vmatpush2.msra.mxu0 0.0
        %444 = vmatprep.subr.mxu0 0.0
        %445 = vmatpush2.msra.mxu0 0.0
        %446 = vmatprep.subr.mxu0 0.0
        %447 = vmatpush2.msra.mxu0 0.0
        %448 = vmatprep.subr.mxu0 0.0
        %449 = vmatpush2.msra.mxu0 0.0
        %450 = vmatprep.subr.mxu0 0.0
        %451 = vmatpush2.msra.mxu0 0.0
        %452 = vmatprep.subr.mxu0 0.0
        %453 = vmatpush2.msra.mxu0 0.0
        %454 = vmatprep.mubr.f32.mxu0 0.0
        %455 = vmatmul.mubr.f32.gmra.mxu0 %v388
        %v456 = vpop.f32.mrf.mxu0
        %v457 = vadd.f32 0.0, %v456
        %v458 = vpop.f32.mrf.mxu0
        %459 = vdwg.mxu0
        %v460 = vld [vmem:[%s3] sm:$0x1]
        %v461 = vadd.f32 %v379, %v457
        %v463 = vlaneseq
        %v464 = vshrl.u32 %v463, 7
        %v465 = vsub.s32 0, %v464
        %v466 = vrot.slane %v460, %v465
        %v468 = vadd.f32 %v461, %v466
        %v469 = vxor.u32 %v468, 2147483648
        %v470 = vmul.f32 %v469, 1.442695
        %v471 = vpow.pop %v470
        %v472 = vadd.f32 %v471, 1.0
        %v473 = vrcp.pop %v472
        %v474 = vmul.f32 1.0, %v473
        %476 = vrot.lane.b32.xlu0 %v457, 96
        %v477 = vpop.permute.xlu0 %476
        %v479 = vmul.f32 %v474, %v477
        %481 = vrot.lane.b32.xlu0 %v479, 32
        %v482 = vpop.permute.xlu0 %481
        %v484 = vadd.f32 %v379, %v482
        %v485 = vadd.f32 %v484, %v466
        %v486 = vxor.u32 %v485, 2147483648
        %v487 = vmul.f32 %v486, 1.442695
        %v488 = vpow.pop %v487
        %v489 = vadd.f32 %v488, 1.0
        %v490 = vrcp.pop %v489
        %v491 = vmul.f32 1.0, %v490
        %492 = vrot.lane.b32.xlu0 %v304, 64
        %v493 = vpop.permute.xlu0 %492
        %v495 = vsub.f32 %v491, %v493
        %497 = vrot.lane.b32.xlu0 %v495, 64
        %v498 = vpop.permute.xlu0 %497
        %v500 = vmul.f32 %v474, %v498
        %v501 = vadd.f32 %v304, %v500
        %502 = vst.msk [vmem:[#allocation2] sm:$0xff] %vm386, %v501
        %p503 = scmp.eq.s32.totalorder %s27, 7
        // Predicated region
        $region61: #{tpu_custom_call.1} parent=39 // pred_check
          %p504 = pneg %p503
        $region62: #{tpu_custom_call.1} parent=39 // pred_check_branch
          %506 = sbr.rel (%p504) target = $region64
        $region63: #{tpu_custom_call.1} parent=39 // pred_region
          %507 = vst.msk [vmem:[#allocation11] sm:$0xff] %vm386, %v501
        $region64: #{tpu_custom_call.1} parent=39 // pred_fallthru
          _
        // Predicated region
        $region65: #{tpu_custom_call.1} parent=39 // pred_check
          %p508 = pneg %p169
        $region66: #{tpu_custom_call.1} parent=39 // pred_check_branch
          %510 = sbr.rel (%p508) target = $region68
        $region67: #{tpu_custom_call.1} parent=39 // pred_region
          %s512 = ssub.s32 128, 128
          %513 = vsyncadd [#allocation5], %s512
          %s514 = smul.addr %s26, 128
          %s515 = scalar_lea.hbm %s5, %s514
          %s517 = sshll.u32 [#allocation11], 4
          %s518 = int_to_ptr.vmem [resolvable:$true] %s517
          %520 = dma.vmem_to_hbm [thread:$0]  %s518, 128, %s515, [#allocation5]
        $region68: #{tpu_custom_call.1} parent=39 // pred_fallthru
          _
        // Predicated region
        $region69: #{tpu_custom_call.1} parent=39 // pred_check
          %p521 = pneg %p169
        $region70: #{tpu_custom_call.1} parent=39 // pred_check_branch
          %523 = sbr.rel (%p521) target = $region72
        $region71: #{tpu_custom_call.1} parent=39 // pred_region
          %524 = dma.done [#allocation5], 128
        $region72: #{tpu_custom_call.1} parent=39 // pred_fallthru
          _
      $region40: #{tpu_custom_call.1} parent=5 // pred_fallthru
        _
      %p525 = scmp.le.s32.totalorder 2, %s17
      // Predicated region
      $region73: #{tpu_custom_call.1} parent=5 // pred_check
        %p526 = pneg %p525
      $region74: #{tpu_custom_call.1} parent=5 // pred_check_branch
        %528 = sbr.rel (%p526) target = $region76
      $region75: #{tpu_custom_call.1} parent=5 // pred_region
        %s529 = ssub.s32 %s17, 2
      $region76: #{tpu_custom_call.1} parent=5 // pred_fallthru
        _
    $region6: #{tpu_custom_call.1} parent=1 // loop_footer
      %s21 = sadd.s32 1, %s17
    $region7: #{tpu_custom_call.1} parent=1 // loop_footer_branch
      %16 = sbr.rel target = $region3
    $region8: #{tpu_custom_call.1} parent=1 // loop_exit
      _
    %530 = vsyncpa [#allocation4], 1
    %s531 = scalar_lea.sflag [#allocation4], 1
    %532 = vsyncpa %s531, 1
    %533 = vsyncpa [#allocation7], 1
    %534 = vsyncpa [#allocation10], 1
    %535 = vsyncpa [#allocation5], 1
    %s536 = scalar_lea.sflag [#allocation5], 1
    %537 = vsyncpa %s536, 1

</llo_original>
